<compile_context>
chip_gen: v7x
topology: tpu7x:2x2x1
jax: 0.10.0
libtpu: 0.0.40
codegen_flags: <defaults>
</compile_context>

<pallas_src>
import jax
import jax.numpy as jnp
from jax.experimental import pallas as pl
from jax.experimental.pallas import tpu as pltpu

# policy constants (from the PyTorch module body)
Z_LOW, Z_HIGH = 0.05, 0.4
DZ = 0.02
W_OPEN, W_CLOSE = 0.11, 0.05
GRIPPER_FORCE = 20.0

# input slab rows:  0 = t, 1..3 = object.position xyz, 4..6 = ee.position xyz, 7 = pad
# output slab rows: 0..2 = action position xyz, 3 = pad, 4..7 = orientation quat,
#                   8 = gripper_width, 9 = gripper_force, 10..15 = pad
IN_ROWS = 8
OUT_ROWS = 16


def _grasp_kernel(x_ref, o_ref):
    # every row is a lane-dense (1, TB) vector
    t = x_ref[0:1, :]
    obj_x = x_ref[1:2, :]
    obj_y = x_ref[2:3, :]
    obj_z = x_ref[3:4, :]
    ee_x = x_ref[4:5, :]
    ee_y = x_ref[5:6, :]
    ee_z = x_ref[6:7, :]

    zero = jnp.zeros_like(t)
    one = jnp.ones_like(t)

    # phase predicates (mutually exclusive, mirroring the if/elif chain)
    c0 = t < 50.0
    c1 = jnp.logical_and(t >= 50.0, t < 100.0)
    c2 = jnp.logical_and(t >= 100.0, t < 150.0)
    c3 = jnp.logical_and(t >= 150.0, t < 220.0)
    c4 = t >= 220.0

    # descend schedule for phase 1
    s = (t - 50.0) * (1.0 / 50.0)
    z_mid = Z_HIGH - s * (Z_HIGH - Z_LOW)

    c01 = jnp.logical_or(c0, c1)
    # end_effector.position  (default = action_space.new() zeros)
    pos_x = jnp.where(c01, obj_x, jnp.where(c3, ee_x, zero))
    pos_y = jnp.where(c01, obj_y, jnp.where(c3, ee_y, zero))
    pos_z = jnp.where(c0, obj_z + Z_HIGH,
            jnp.where(c1, obj_z + z_mid,
            jnp.where(c3, ee_z + DZ, zero)))

    # end_effector.orientation = [0, 1, 0, 0] only in phase 0, else default 0
    orient_y = jnp.where(c0, one, zero)

    # gripper_width / gripper_force
    close_w = jnp.logical_or(jnp.logical_or(c2, c3), c4)
    width = jnp.where(c0, W_OPEN, jnp.where(close_w, W_CLOSE, zero))
    force = jnp.where(jnp.logical_or(c2, c3),
                      jnp.full_like(t, GRIPPER_FORCE), zero)

    # one full-tile zero store (covers defaults + pad rows), then row writes
    o_ref[...] = jnp.zeros_like(o_ref)
    o_ref[0:1, :] = pos_x
    o_ref[1:2, :] = pos_y
    o_ref[2:3, :] = pos_z
    o_ref[5:6, :] = orient_y          # orientation = [0, 1, 0, 0]
    o_ref[8:9, :] = width
    o_ref[9:10, :] = force


def grasping_policy(t, obj_pos, ee_pos, *, max_tile=1024):
    """Batched GraspingPolicy.forward.

    t:        (B,)  int/float timestep per env
    obj_pos:  (B,3) states.object.position
    ee_pos:   (B,3) states.robot.end_effector.position
    Returns (pos (B,3), orient (B,4), width (B,), force (B,)).
    Unset action fields keep the action_space.new() default (zeros).
    """
    B = t.shape[0]
    TB = min(max_tile, pl.cdiv(B, 128) * 128)       # lane tile, multiple of 128
    B_pad = pl.cdiv(B, TB) * TB

    # pack the lane-dense input slab: (IN_ROWS, B_pad)
    slab = jnp.zeros((IN_ROWS, B_pad), jnp.float32)
    slab = slab.at[0, :B].set(t.astype(jnp.float32).reshape(B))
    slab = slab.at[1:4, :B].set(obj_pos.astype(jnp.float32).T)
    slab = slab.at[4:7, :B].set(ee_pos.astype(jnp.float32).T)

    out = pl.pallas_call(
        _grasp_kernel,
        out_shape=jax.ShapeDtypeStruct((OUT_ROWS, B_pad), jnp.float32),
        grid=(B_pad // TB,),
        in_specs=[pl.BlockSpec((IN_ROWS, TB), lambda i: (0, i))],
        out_specs=pl.BlockSpec((OUT_ROWS, TB), lambda i: (0, i)),
        compiler_params=pltpu.CompilerParams(
            dimension_semantics=("parallel",)),
    )(slab)

    pos = out[0:3, :B].T          # (B, 3)
    orient = out[4:8, :B].T       # (B, 4)
    width = out[8, :B]            # (B,)
    force = out[9, :B]            # (B,)
    return pos, orient, width, force


if __name__ == "__main__":
    B = 8
    key = jax.random.PRNGKey(0)
    k1, k2 = jax.random.split(key)

    # timesteps spanning every branch: <50, 50-100, 100-150, 150-220, >=220
    t = jnp.arange(B, dtype=jnp.int32) * 40
    obj = jax.random.uniform(k1, (B, 3), jnp.float32, minval=-0.5, maxval=0.5)
    ee = jax.random.uniform(k2, (B, 3), jnp.float32, minval=-0.5, maxval=0.5)

    pos, orient, width, force = grasping_policy(t, obj, ee)
    jax.block_until_ready((pos, orient, width, force))

    # pure-JAX reference for the piecewise semantics
    tf = t.astype(jnp.float32)[:, None]
    c0 = tf < 50.0
    c1 = (tf >= 50.0) & (tf < 100.0)
    c2 = (tf >= 100.0) & (tf < 150.0)
    c3 = (tf >= 150.0) & (tf < 220.0)
    c4 = tf >= 220.0
    s = (tf - 50.0) / 50.0
    z_mid = Z_HIGH - s * (Z_HIGH - Z_LOW)
    zhat = jnp.array([0.0, 0.0, 1.0])[None, :]
    ref_pos = jnp.where(c0, obj + zhat * Z_HIGH,
              jnp.where(c1, obj + zhat * z_mid,
              jnp.where(c3, ee + zhat * DZ, 0.0)))
    ref_orient = jnp.where(c0, jnp.array([0.0, 1.0, 0.0, 0.0])[None, :], 0.0)
    ref_width = jnp.where(c0[:, 0], W_OPEN,
                jnp.where((c2 | c3 | c4)[:, 0], W_CLOSE, 0.0))
    ref_force = jnp.where((c2 | c3)[:, 0], GRIPPER_FORCE, 0.0)

    assert jnp.allclose(pos, ref_pos, atol=1e-6)
    assert jnp.allclose(orient, ref_orient, atol=1e-6)
    assert jnp.allclose(width, ref_width, atol=1e-6)
    assert jnp.allclose(force, ref_force, atol=1e-6)

    print("KERNEL_OK")
</pallas_src>

<mosaic_0001>
module attributes {stable_mosaic.version = 11 : i64} {
  func.func @_grasp_kernel(%arg0: i32, %arg1: memref<8x128xf32, #tpu.memory_space<vmem>>, %arg2: memref<16x128xf32, #tpu.memory_space<vmem>>) attributes {dimension_semantics = [#tpu.dimension_semantics<parallel>], iteration_bounds = array<i64: 1>, scalar_prefetch = 0 : i64, scratch_operands = 0 : i64, tpu.core_type = #tpu.core_type<tc>, window_params = [{transform_indices = @transform_0, window_bounds = array<i64: 8, 128>}, {transform_indices = @transform_1, window_bounds = array<i64: 16, 128>}]} {
    %c0 = arith.constant 0 : index
    %c0_0 = arith.constant 0 : index
    %0 = vector.load %arg1[%c0, %c0_0] : memref<8x128xf32, #tpu.memory_space<vmem>>, vector<1x128xf32>
    %c1 = arith.constant 1 : index
    %c0_1 = arith.constant 0 : index
    %1 = vector.load %arg1[%c1, %c0_1] : memref<8x128xf32, #tpu.memory_space<vmem>>, vector<1x128xf32>
    %c2 = arith.constant 2 : index
    %c0_2 = arith.constant 0 : index
    %2 = vector.load %arg1[%c2, %c0_2] : memref<8x128xf32, #tpu.memory_space<vmem>>, vector<1x128xf32>
    %c3 = arith.constant 3 : index
    %c0_3 = arith.constant 0 : index
    %3 = vector.load %arg1[%c3, %c0_3] : memref<8x128xf32, #tpu.memory_space<vmem>>, vector<1x128xf32>
    %c4 = arith.constant 4 : index
    %c0_4 = arith.constant 0 : index
    %4 = vector.load %arg1[%c4, %c0_4] : memref<8x128xf32, #tpu.memory_space<vmem>>, vector<1x128xf32>
    %c5 = arith.constant 5 : index
    %c0_5 = arith.constant 0 : index
    %5 = vector.load %arg1[%c5, %c0_5] : memref<8x128xf32, #tpu.memory_space<vmem>>, vector<1x128xf32>
    %c6 = arith.constant 6 : index
    %c0_6 = arith.constant 0 : index
    %6 = vector.load %arg1[%c6, %c0_6] : memref<8x128xf32, #tpu.memory_space<vmem>>, vector<1x128xf32>
    %cst = arith.constant 0.000000e+00 : f32
    %7 = vector.broadcast %cst : f32 to vector<1x128xf32>
    %cst_7 = arith.constant 1.000000e+00 : f32
    %8 = vector.broadcast %cst_7 : f32 to vector<1x128xf32>
    %cst_8 = arith.constant 5.000000e+01 : f32
    %9 = vector.broadcast %cst_8 : f32 to vector<1x128xf32>
    %10 = arith.cmpf olt, %0, %9 : vector<1x128xf32>
    %cst_9 = arith.constant 5.000000e+01 : f32
    %11 = vector.broadcast %cst_9 : f32 to vector<1x128xf32>
    %12 = arith.cmpf oge, %0, %11 : vector<1x128xf32>
    %cst_10 = arith.constant 1.000000e+02 : f32
    %13 = vector.broadcast %cst_10 : f32 to vector<1x128xf32>
    %14 = arith.cmpf olt, %0, %13 : vector<1x128xf32>
    %15 = arith.andi %12, %14 : vector<1x128xi1>
    %cst_11 = arith.constant 1.000000e+02 : f32
    %16 = vector.broadcast %cst_11 : f32 to vector<1x128xf32>
    %17 = arith.cmpf oge, %0, %16 : vector<1x128xf32>
    %cst_12 = arith.constant 1.500000e+02 : f32
    %18 = vector.broadcast %cst_12 : f32 to vector<1x128xf32>
    %19 = arith.cmpf olt, %0, %18 : vector<1x128xf32>
    %20 = arith.andi %17, %19 : vector<1x128xi1>
    %cst_13 = arith.constant 1.500000e+02 : f32
    %21 = vector.broadcast %cst_13 : f32 to vector<1x128xf32>
    %22 = arith.cmpf oge, %0, %21 : vector<1x128xf32>
    %cst_14 = arith.constant 2.200000e+02 : f32
    %23 = vector.broadcast %cst_14 : f32 to vector<1x128xf32>
    %24 = arith.cmpf olt, %0, %23 : vector<1x128xf32>
    %25 = arith.andi %22, %24 : vector<1x128xi1>
    %cst_15 = arith.constant 2.200000e+02 : f32
    %26 = vector.broadcast %cst_15 : f32 to vector<1x128xf32>
    %27 = arith.cmpf oge, %0, %26 : vector<1x128xf32>
    %cst_16 = arith.constant 5.000000e+01 : f32
    %28 = vector.broadcast %cst_16 : f32 to vector<1x128xf32>
    %29 = arith.subf %0, %28 : vector<1x128xf32>
    %cst_17 = arith.constant 2.000000e-02 : f32
    %30 = vector.broadcast %cst_17 : f32 to vector<1x128xf32>
    %31 = arith.mulf %29, %30 : vector<1x128xf32>
    %cst_18 = arith.constant 3.500000e-01 : f32
    %32 = vector.broadcast %cst_18 : f32 to vector<1x128xf32>
    %33 = arith.mulf %31, %32 : vector<1x128xf32>
    %cst_19 = arith.constant 4.000000e-01 : f32
    %34 = vector.broadcast %cst_19 : f32 to vector<1x128xf32>
    %35 = arith.subf %34, %33 : vector<1x128xf32>
    %36 = arith.ori %10, %15 : vector<1x128xi1>
    %37 = arith.select %25, %4, %7 : vector<1x128xi1>, vector<1x128xf32>
    %38 = arith.select %36, %1, %37 : vector<1x128xi1>, vector<1x128xf32>
    %39 = arith.select %25, %5, %7 : vector<1x128xi1>, vector<1x128xf32>
    %40 = arith.select %36, %2, %39 : vector<1x128xi1>, vector<1x128xf32>
    %cst_20 = arith.constant 4.000000e-01 : f32
    %41 = vector.broadcast %cst_20 : f32 to vector<1x128xf32>
    %42 = arith.addf %3, %41 : vector<1x128xf32>
    %43 = arith.addf %3, %35 : vector<1x128xf32>
    %cst_21 = arith.constant 2.000000e-02 : f32
    %44 = vector.broadcast %cst_21 : f32 to vector<1x128xf32>
    %45 = arith.addf %6, %44 : vector<1x128xf32>
    %46 = arith.select %25, %45, %7 : vector<1x128xi1>, vector<1x128xf32>
    %47 = arith.select %15, %43, %46 : vector<1x128xi1>, vector<1x128xf32>
    %48 = arith.select %10, %42, %47 : vector<1x128xi1>, vector<1x128xf32>
    %49 = arith.select %10, %8, %7 : vector<1x128xi1>, vector<1x128xf32>
    %50 = arith.ori %20, %25 : vector<1x128xi1>
    %51 = arith.ori %50, %27 : vector<1x128xi1>
    %cst_22 = arith.constant 5.000000e-02 : f32
    %52 = vector.broadcast %cst_22 : f32 to vector<1x128xf32>
    %53 = arith.select %51, %52, %7 : vector<1x128xi1>, vector<1x128xf32>
    %cst_23 = arith.constant 1.100000e-01 : f32
    %54 = vector.broadcast %cst_23 : f32 to vector<1x128xf32>
    %55 = arith.select %10, %54, %53 : vector<1x128xi1>, vector<1x128xf32>
    %56 = arith.ori %20, %25 : vector<1x128xi1>
    %cst_24 = arith.constant 2.000000e+01 : f32
    %57 = vector.broadcast %cst_24 : f32 to vector<1x128xf32>
    %58 = arith.select %56, %57, %7 : vector<1x128xi1>, vector<1x128xf32>
    %cst_25 = arith.constant 0.000000e+00 : f32
    %59 = vector.broadcast %cst_25 : f32 to vector<16x128xf32>
    %c0_26 = arith.constant 0 : index
    %c0_27 = arith.constant 0 : index
    %60 = vector.load %arg2[%c0_26, %c0_27] : memref<16x128xf32, #tpu.memory_space<vmem>>, vector<16x128xf32>
    tpu.vector_store %arg2[%c0_26, %c0_27], %59 {strides = array<i32>} : memref<16x128xf32, #tpu.memory_space<vmem>>, vector<16x128xf32>,
    %c0_28 = arith.constant 0 : index
    %c0_29 = arith.constant 0 : index
    %61 = vector.load %arg2[%c0_28, %c0_29] : memref<16x128xf32, #tpu.memory_space<vmem>>, vector<1x128xf32>
    tpu.vector_store %arg2[%c0_28, %c0_29], %38 {strides = array<i32>} : memref<16x128xf32, #tpu.memory_space<vmem>>, vector<1x128xf32>,
    %c1_30 = arith.constant 1 : index
    %c0_31 = arith.constant 0 : index
    %62 = vector.load %arg2[%c1_30, %c0_31] : memref<16x128xf32, #tpu.memory_space<vmem>>, vector<1x128xf32>
    tpu.vector_store %arg2[%c1_30, %c0_31], %40 {strides = array<i32>} : memref<16x128xf32, #tpu.memory_space<vmem>>, vector<1x128xf32>,
    %c2_32 = arith.constant 2 : index
    %c0_33 = arith.constant 0 : index
    %63 = vector.load %arg2[%c2_32, %c0_33] : memref<16x128xf32, #tpu.memory_space<vmem>>, vector<1x128xf32>
    tpu.vector_store %arg2[%c2_32, %c0_33], %48 {strides = array<i32>} : memref<16x128xf32, #tpu.memory_space<vmem>>, vector<1x128xf32>,
    %c5_34 = arith.constant 5 : index
    %c0_35 = arith.constant 0 : index
    %64 = vector.load %arg2[%c5_34, %c0_35] : memref<16x128xf32, #tpu.memory_space<vmem>>, vector<1x128xf32>
    tpu.vector_store %arg2[%c5_34, %c0_35], %49 {strides = array<i32>} : memref<16x128xf32, #tpu.memory_space<vmem>>, vector<1x128xf32>,
    %c8 = arith.constant 8 : index
    %c0_36 = arith.constant 0 : index
    %65 = vector.load %arg2[%c8, %c0_36] : memref<16x128xf32, #tpu.memory_space<vmem>>, vector<1x128xf32>
    tpu.vector_store %arg2[%c8, %c0_36], %55 {strides = array<i32>} : memref<16x128xf32, #tpu.memory_space<vmem>>, vector<1x128xf32>,
    %c9 = arith.constant 9 : index
    %c0_37 = arith.constant 0 : index
    %66 = vector.load %arg2[%c9, %c0_37] : memref<16x128xf32, #tpu.memory_space<vmem>>, vector<1x128xf32>
    tpu.vector_store %arg2[%c9, %c0_37], %58 {strides = array<i32>} : memref<16x128xf32, #tpu.memory_space<vmem>>, vector<1x128xf32>,
    return
  }
  func.func @transform_0(%arg0: i32) -> (i32, i32) {
    %c0_i32 = arith.constant 0 : i32
    %c0_i32_0 = arith.constant 0 : i32
    return %c0_i32, %arg0 : i32, i32
  }
  func.func @transform_1(%arg0: i32) -> (i32, i32) {
    %c0_i32 = arith.constant 0 : i32
    %c0_i32_0 = arith.constant 0 : i32
    return %c0_i32, %arg0 : i32, i32
  }
}

</mosaic_0001>

<llo_original>
// kernel: tpu_custom_call.1
$region0: #{tpu_custom_call.1}
  #allocation0 [shape = 'u32[]', space=smem, size = 0x4, offset = 0x4, fixed_abs, tag = 'smem constant byte address 0x4 - core index']
  #allocation1 [shape = 'u32[144,128]{1,0:T(1,128)}', space=vmem, size = 0x12000, scoped, tag = 'internal scratch']
  %s0 = inlined_call_operand.hbm [shape: f32[8,128], index: 0, kind: input, shape index: {}]
  %s1 = inlined_call_operand.hbm [shape: f32[16,128], index: 1, kind: output, shape index: {}]
  %s2 = sld [smem:[#allocation0]]
  $region18: #{tpu_custom_call.1} parent=0
    _
  %s4 = ssub.s32 1, %s2
  %s5 = scalar_select 0, %s4, %s2
  $region1: #{tpu_custom_call.1} parent=0
    #allocation2 [shape = 'u8[4096]{0}', space=vmem, size = 0x1000, scoped, tag = 'input window, operand 0, single buffered']
    #allocation3 [shape = 's32[1]{0}', space=sflag, size = 0x4, scoped, tag = 'scoped memory for tpu_custom_call.1']
    #allocation4 [shape = 's32[1]{0}', space=sflag, size = 0x4, scoped, tag = 'scoped memory for tpu_custom_call.1']
    #allocation5 [shape = 'u8[8192]{0}', space=vmem, size = 0x2000, scoped, tag = 'output window, operand 0, single buffered']
    %6 = vsyncpa [#allocation3], 0
    %7 = vsyncpa [#allocation4], 0
    // Predicated region
    $region2: #{tpu_custom_call.1} parent=1 // pred_check
      _
    $region3: #{tpu_custom_call.1} parent=1 // pred_check_branch
      %9 = sbr.rel (0) target = $region5
    $region4: #{tpu_custom_call.1} parent=1 // pred_region
      %s11 = ssub.s32 128, 128
      %12 = vsyncadd [#allocation3], %s11
      %s14 = sshll.u32 [#allocation2], 4
      %s15 = int_to_ptr.vmem [resolvable:$true] %s14
      %17 = dma.hbm_to_vmem [thread:$0]  %s0, 128, %s15, [#allocation3]
    $region5: #{tpu_custom_call.1} parent=1 // pred_fallthru
      _
    // Predicated region
    $region6: #{tpu_custom_call.1} parent=1 // pred_check
      _
    $region7: #{tpu_custom_call.1} parent=1 // pred_check_branch
      %19 = sbr.rel (0) target = $region9
    $region8: #{tpu_custom_call.1} parent=1 // pred_region
      %20 = dma.done [#allocation3], 128
    $region9: #{tpu_custom_call.1} parent=1 // pred_fallthru
      _
    %v21 = vld [vmem:[#allocation2] sm:$0x1]
    %v22 = vld [vmem:[#allocation2 + $0x1] sm:$0x1]
    %v23 = vld [vmem:[#allocation2 + $0x2] sm:$0x1]
    %v24 = vld [vmem:[#allocation2 + $0x3] sm:$0x1]
    %v25 = vld [vmem:[#allocation2 + $0x4] sm:$0x1]
    %v26 = vld [vmem:[#allocation2 + $0x5] sm:$0x1]
    %v27 = vld [vmem:[#allocation2 + $0x6] sm:$0x1]
    %vm28 = vcmp.lt.f32.partialorder %v21, 50.0
    %vm29 = vcmp.ge.f32.partialorder %v21, 50.0
    %vm30 = vcmp.lt.f32.partialorder %v21, 100.0
    %vm31 = vmand %vm29, %vm30
    %vm32 = vcmp.ge.f32.partialorder %v21, 100.0
    %vm33 = vcmp.lt.f32.partialorder %v21, 150.0
    %vm34 = vmand %vm32, %vm33
    %vm35 = vcmp.ge.f32.partialorder %v21, 150.0
    %vm36 = vcmp.lt.f32.partialorder %v21, 220.0
    %vm37 = vmand %vm35, %vm36
    %vm38 = vcmp.ge.f32.partialorder %v21, 220.0
    %v39 = vsub.f32 %v21, 50.0
    %v40 = vmul.f32 %v39, 0.02
    %v41 = vmul.f32 %v40, 0.35
    %v42 = vsub.f32 0.4, %v41
    %vm43 = vmor %vm28, %vm31
    %v44 = vsel %vm37, %v25, 0.0
    %v45 = vsel %vm43, %v22, %v44
    %v46 = vsel %vm37, %v26, 0.0
    %v47 = vsel %vm43, %v23, %v46
    %v48 = vadd.f32 %v24, 0.4
    %v49 = vadd.f32 %v24, %v42
    %v50 = vadd.f32 %v27, 0.02
    %v51 = vsel %vm37, %v50, 0.0
    %v52 = vsel %vm31, %v49, %v51
    %v53 = vsel %vm28, %v48, %v52
    %v54 = vsel %vm28, 1.0, 0.0
    %vm55 = vmor %vm34, %vm37
    %vm56 = vmor %vm55, %vm38
    %v57 = vsel %vm56, 0.05, 0.0
    %v58 = vsel %vm28, 0.11, %v57
    %v59 = vsel %vm55, 20.0, 0.0
    %60 = vst [vmem:[#allocation5] sm:$0xff] 0.0
    %61 = vst [vmem:[#allocation5 + $0x8] sm:$0xff] 0.0
    %62 = vst [vmem:[#allocation5] sm:$0x1] %v45
    %63 = vst [vmem:[#allocation5 + $0x1] sm:$0x1] %v47
    %64 = vst [vmem:[#allocation5 + $0x2] sm:$0x1] %v53
    %65 = vst [vmem:[#allocation5 + $0x5] sm:$0x1] %v54
    %66 = vst [vmem:[#allocation5 + $0x8] sm:$0x1] %v58
    %67 = vst [vmem:[#allocation5 + $0x9] sm:$0x1] %v59
    // Predicated region
    $region10: #{tpu_custom_call.1} parent=1 // pred_check
      _
    $region11: #{tpu_custom_call.1} parent=1 // pred_check_branch
      %69 = sbr.rel (0) target = $region13
    $region12: #{tpu_custom_call.1} parent=1 // pred_region
      %s71 = ssub.s32 256, 256
      %72 = vsyncadd [#allocation4], %s71
      %s73 = sshll.u32 [#allocation5], 4
      %s74 = int_to_ptr.vmem [resolvable:$true] %s73
      %79 = dma.vmem_to_hbm [thread:$0]  %s74, 256, %s1, [#allocation4], 128, 128, 8
    $region13: #{tpu_custom_call.1} parent=1 // pred_fallthru
      _
    // Predicated region
    $region14: #{tpu_custom_call.1} parent=1 // pred_check
      _
    $region15: #{tpu_custom_call.1} parent=1 // pred_check_branch
      %81 = sbr.rel (0) target = $region17
    $region16: #{tpu_custom_call.1} parent=1 // pred_region
      %82 = dma.done [#allocation4], 256
    $region17: #{tpu_custom_call.1} parent=1 // pred_fallthru
      _
    %83 = vsyncpa [#allocation3], 1
    %84 = vsyncpa [#allocation4], 1

</llo_original>
